<compile_context>
chip_gen: v5e
topology: v5e:2x2
jax: 0.10.0
libtpu: 0.0.40
codegen_flags: <defaults>
</compile_context>

<pallas_src>
import functools

import numpy as np
import jax
import jax.numpy as jnp
from jax.experimental import pallas as pl
from jax.experimental.pallas import tpu as pltpu

KEY_MAP = {'C': 0, 'C#': 1, 'Df': 1, 'D': 2, 'D#': 3, 'Ef': 3, 'E': 4, 'F': 5,
           'F#': 6, 'Gf': 6, 'G': 7, 'G#': 8, 'Af': 8, 'A': 9, 'A#': 10,
           'Bf': 10, 'B': 11}


def get_major_diatonic_triads(key):
    b = KEY_MAP[key]
    triads = [[b, b + 4, b + 7], [b + 2, b + 5, b + 9], [b + 4, b + 7, b + 11],
              [b + 5, b + 9, b + 12], [b + 7, b + 11, b + 14],
              [b + 9, b + 12, b + 16], [b + 11, b + 14, b + 17],
              [b + 12, b + 16, b + 19]]
    return [[z + octave * 12 for z in y] for y in triads for octave in range(8)]


def get_minor_diatonic_triads(key):
    b = KEY_MAP[key]
    triads = [[b, b + 3, b + 7], [b + 2, b + 5, b + 8], [b + 3, b + 7, b + 10],
              [b + 5, b + 8, b + 12], [b + 7, b + 10, b + 14],
              [b + 8, b + 12, b + 15], [b + 10, b + 14, b + 17],
              [b + 12, b + 15, b + 19]]
    return [[z + octave * 12 for z in y] for y in triads for octave in range(8)]


_PAD_NOTE = -1  # never > 100 and never a member of any triad -> contributes 0


def _theory_loss_kernel(y_ref, c0_ref, c1_ref, c2_ref, out_ref):
    y = y_ref[...]                                   # (1, Np) int32, lane-major
    c0 = c0_ref[...]                                 # (128, 1) int32 triad tone 0
    c1 = c1_ref[...]                                 # (128, 1) triad tone 1
    c2 = c2_ref[...]                                 # (128, 1) triad tone 2

    # Membership of every note in every triad, computed ONCE: (128, Np).
    m = ((y == c0) | (y == c1) | (y == c2)).astype(jnp.int32)

    # Membership of y[i-1] / y[i-2] by lane rotation (XLU) instead of two more
    # full member() computations (VALU is the saturating slot here).
    # Lane wrap-around only affects i < 2, which the idx >= 3 gate masks.
    m1 = pltpu.roll(m, shift=1, axis=1)              # row i: y[i-1] membership
    m2 = pltpu.roll(m, shift=2, axis=1)              # row i: y[i-2] membership
    cond = m & m1 & m2                               # (128, Np)
    hits = jnp.sum(cond, axis=0, keepdims=True)      # (1, Np) triads hit per note

    # Gate computed on the cheap (1, Np) row and applied AFTER the reduction.
    prev1 = pltpu.roll(y, shift=1, axis=1)           # y[i-1] (wrap masked below)
    prev2 = pltpu.roll(y, shift=2, axis=1)           # y[i-2]
    idx = jax.lax.broadcasted_iota(jnp.int32, y.shape, 1)
    gate = (idx >= 3) & (prev1 != prev2)             # |overlap| > 1 requires distinct

    # +1000 per note > 100 (all positions), -100 per gated triad hit.
    # `previous_count > 2` branch of the original can never trigger
    # (the window y[i-2:i] has only 2 elements), so it contributes nothing.
    contrib = 1000 * (y > 100).astype(jnp.int32) - 100 * jnp.where(gate, hits, 0)

    out_ref[0] = 1000 + jnp.sum(contrib)


@functools.lru_cache(maxsize=None)
def _build_theory_loss_call(key, n_pad):
    """Cached per (musical key, padded length): builds constants + compiled call."""
    major = np.asarray(get_major_diatonic_triads(key), dtype=np.int32)   # (64, 3)
    minor = np.asarray(get_minor_diatonic_triads(key), dtype=np.int32)   # (64, 3)
    triads = np.concatenate([major, minor], axis=0)                      # (128, 3)

    c0 = jnp.asarray(triads[:, 0:1])                 # (128, 1) int32
    c1 = jnp.asarray(triads[:, 1:2])
    c2 = jnp.asarray(triads[:, 2:3])

    call = pl.pallas_call(
        _theory_loss_kernel,
        out_shape=jax.ShapeDtypeStruct((1,), jnp.int32),
        in_specs=[pl.BlockSpec(memory_space=pltpu.MemorySpace.VMEM)] * 4,
        out_specs=pl.BlockSpec(memory_space=pltpu.MemorySpace.SMEM),
    )

    @jax.jit
    def run(y_lane):
        return call(y_lane, c0, c1, c2)[0]

    return run


def theory_loss(x, y, key):
    """Pallas implementation of TheoryLoss(key).forward(x, y). `x` is unused."""
    del x  # unused in the original forward as well

    y = jnp.asarray(y, jnp.int32)
    n = y.shape[0]
    n_pad = max(128, ((n + 127) // 128) * 128)       # lane-align (bucketed cache key)
    y_lane = jnp.pad(y, (0, n_pad - n),
                     constant_values=_PAD_NOTE).reshape(1, n_pad)
    return _build_theory_loss_call(key, n_pad)(y_lane)


def reference_loss(y_list, key):
    """Pure-Python reference mirroring the PyTorch forward (minus the
    type-erroring scale loops)."""
    major_tri = get_major_diatonic_triads(key)
    minor_tri = get_minor_diatonic_triads(key)
    loss = 1000
    for i, note in enumerate(y_list):
        if note > 100:
            loss += 1000
        if i >= 3:
            prev = list(y_list[i - 2:i])
            if prev.count(note) > 2:
                loss += 100  # unreachable: window has 2 elements
            for triad in major_tri:
                if note in triad and len(set(triad).intersection(prev)) > 1:
                    loss -= 100
            for triad in minor_tri:
                if note in triad and len(set(triad).intersection(prev)) > 1:
                    loss -= 100
    return loss


if __name__ == "__main__":
    music_key = 'C'
    rng = jax.random.PRNGKey(0)
    n = 16
    y = jax.random.randint(rng, (n,), 0, 112, dtype=jnp.int32)
    x = jax.random.normal(jax.random.fold_in(rng, 1), (2, 4, 16, 16),
                          dtype=jnp.float32)  # unused by the forward pass

    loss = jax.block_until_ready(theory_loss(x, y, music_key))
    ref = reference_loss([int(v) for v in y], music_key)
    assert int(loss) == ref, (int(loss), ref)
    print("KERNEL_OK")
</pallas_src>

<mosaic_0001>
module attributes {stable_mosaic.version = 11 : i64} {
  func.func @_theory_loss_kernel(%arg0: memref<1x128xi32, #tpu.memory_space<vmem>>, %arg1: memref<128x1xi32, #tpu.memory_space<vmem>>, %arg2: memref<128x1xi32, #tpu.memory_space<vmem>>, %arg3: memref<128x1xi32, #tpu.memory_space<vmem>>, %arg4: memref<1xi32, #tpu.memory_space<smem>>) attributes {dimension_semantics = [], scalar_prefetch = 0 : i64, scratch_operands = 0 : i64, tpu.core_type = #tpu.core_type<tc>} {
    %c0 = arith.constant 0 : index
    %c0_0 = arith.constant 0 : index
    %0 = vector.load %arg0[%c0, %c0_0] : memref<1x128xi32, #tpu.memory_space<vmem>>, vector<1x128xi32>
    %c0_1 = arith.constant 0 : index
    %c0_2 = arith.constant 0 : index
    %1 = vector.load %arg1[%c0_1, %c0_2] : memref<128x1xi32, #tpu.memory_space<vmem>>, vector<128x1xi32>
    %c0_3 = arith.constant 0 : index
    %c0_4 = arith.constant 0 : index
    %2 = vector.load %arg2[%c0_3, %c0_4] : memref<128x1xi32, #tpu.memory_space<vmem>>, vector<128x1xi32>
    %c0_5 = arith.constant 0 : index
    %c0_6 = arith.constant 0 : index
    %3 = vector.load %arg3[%c0_5, %c0_6] : memref<128x1xi32, #tpu.memory_space<vmem>>, vector<128x1xi32>
    %4 = vector.broadcast %0 : vector<1x128xi32> to vector<128x128xi32>
    %5 = vector.broadcast %1 : vector<128x1xi32> to vector<128x128xi32>
    %6 = arith.cmpi eq, %4, %5 : vector<128x128xi32>
    %7 = vector.broadcast %0 : vector<1x128xi32> to vector<128x128xi32>
    %8 = vector.broadcast %2 : vector<128x1xi32> to vector<128x128xi32>
    %9 = arith.cmpi eq, %7, %8 : vector<128x128xi32>
    %10 = arith.ori %6, %9 : vector<128x128xi1>
    %11 = vector.broadcast %0 : vector<1x128xi32> to vector<128x128xi32>
    %12 = vector.broadcast %3 : vector<128x1xi32> to vector<128x128xi32>
    %13 = arith.cmpi eq, %11, %12 : vector<128x128xi32>
    %14 = arith.ori %10, %13 : vector<128x128xi1>
    %15 = arith.extui %14 : vector<128x128xi1> to vector<128x128xi32>
    %c1_i32 = arith.constant 1 : i32
    %16 = tpu.dynamic_rotate %15 by %c1_i32 dim 1 : vector<128x128xi32>, i32 -> vector<128x128xi32>
    %c2_i32 = arith.constant 2 : i32
    %17 = tpu.dynamic_rotate %15 by %c2_i32 dim 1 : vector<128x128xi32>, i32 -> vector<128x128xi32>
    %18 = arith.andi %15, %16 : vector<128x128xi32>
    %19 = arith.andi %18, %17 : vector<128x128xi32>
    %cst = arith.constant dense<0> : vector<128xi32>
    %20 = vector.multi_reduction <add>, %19, %cst [0] : vector<128x128xi32> to vector<128xi32>
    %21 = vector.shape_cast %20 : vector<128xi32> to vector<1x128xi32>
    %c1_i32_7 = arith.constant 1 : i32
    %22 = tpu.dynamic_rotate %0 by %c1_i32_7 dim 1 : vector<1x128xi32>, i32 -> vector<1x128xi32>
    %c2_i32_8 = arith.constant 2 : i32
    %23 = tpu.dynamic_rotate %0 by %c2_i32_8 dim 1 : vector<1x128xi32>, i32 -> vector<1x128xi32>
    %24 = tpu.iota {dimensions = array<i32: 1>} : vector<1x128xi32>
    %c3_i32 = arith.constant 3 : i32
    %25 = vector.broadcast %c3_i32 : i32 to vector<1x128xi32>
    %26 = arith.cmpi sge, %24, %25 : vector<1x128xi32>
    %27 = arith.cmpi ne, %22, %23 : vector<1x128xi32>
    %28 = arith.andi %26, %27 : vector<1x128xi1>
    %c100_i32 = arith.constant 100 : i32
    %29 = vector.broadcast %c100_i32 : i32 to vector<1x128xi32>
    %30 = arith.cmpi sgt, %0, %29 : vector<1x128xi32>
    %31 = arith.extui %30 : vector<1x128xi1> to vector<1x128xi32>
    %c1000_i32 = arith.constant 1000 : i32
    %32 = vector.broadcast %c1000_i32 : i32 to vector<1x128xi32>
    %33 = arith.muli %32, %31 : vector<1x128xi32>
    %c0_i32 = arith.constant 0 : i32
    %34 = vector.broadcast %c0_i32 : i32 to vector<1x128xi32>
    %35 = arith.select %28, %21, %34 : vector<1x128xi1>, vector<1x128xi32>
    %c100_i32_9 = arith.constant 100 : i32
    %36 = vector.broadcast %c100_i32_9 : i32 to vector<1x128xi32>
    %37 = arith.muli %36, %35 : vector<1x128xi32>
    %38 = arith.subi %33, %37 : vector<1x128xi32>
    %39 = vector.shape_cast %38 : vector<1x128xi32> to vector<1x1x128xi32>
    %cst_10 = arith.constant dense<0> : vector<1xi32>
    %40 = vector.multi_reduction <add>, %39, %cst_10 [1, 2] : vector<1x1x128xi32> to vector<1xi32>
    %41 = vector.shape_cast %40 : vector<1xi32> to vector<1x1x1xi32>
    %42 = vector.extract %41[0, 0, 0] : i32 from vector<1x1x1xi32>
    %c1000_i32_11 = arith.constant 1000 : i32
    %43 = arith.addi %c1000_i32_11, %42 : i32
    %c0_12 = arith.constant 0 : index
    %44 = memref.load %arg4[%c0_12] : memref<1xi32, #tpu.memory_space<smem>>
    memref.store %43, %arg4[%c0_12] : memref<1xi32, #tpu.memory_space<smem>>
    return
  }
}

</mosaic_0001>

<llo_original>
// kernel: run.1
$region0: #{run.1}
  #allocation0 [shape = 'u32[]', space=smem, size = 0x4, offset = 0x4, fixed_abs, tag = 'smem constant byte address 0x4 - core index']
  #allocation1 [shape = 'u32[72,128]{1,0:T(1,128)}', space=vmem, size = 0x9000, scoped, tag = 'internal scratch']
  %s0 = inlined_call_operand.hbm [shape: s32[1,128], index: 0, kind: input, shape index: {}]
  %s1 = inlined_call_operand.hbm [shape: s32[128,1], index: 1, kind: input, shape index: {}]
  %s2 = inlined_call_operand.hbm [shape: s32[128,1], index: 2, kind: input, shape index: {}]
  %s3 = inlined_call_operand.hbm [shape: s32[128,1], index: 3, kind: input, shape index: {}]
  %s4 = inlined_call_operand.hbm [shape: s32[1], index: 4, kind: output, shape index: {}]
  %s5 = sld [smem:[#allocation0]]
  $region42: #{run.1} parent=0
    _
  %s7 = ssub.s32 1, %s5
  %s8 = scalar_select 0, %s7, %s5
  $region1: #{run.1} parent=0
    #allocation2 [shape = 'u8[512]{0}', space=vmem, size = 0x400, scoped, tag = 'input window, operand 0, single buffered']
    #allocation3 [shape = 's32[1]{0}', space=sflag, size = 0x4, scoped, tag = 'scoped memory for run.1']
    #allocation4 [shape = 's32[1]{0}', space=sflag, size = 0x4, scoped, tag = 'scoped memory for run.1']
    #allocation5 [shape = 'u8[65536]{0}', space=vmem, size = 0x10000, scoped, tag = 'input window, operand 1, single buffered']
    #allocation6 [shape = 's32[1]{0}', space=sflag, size = 0x4, scoped, tag = 'scoped memory for run.1']
    #allocation7 [shape = 'u8[65536]{0}', space=vmem, size = 0x10000, scoped, tag = 'input window, operand 2, single buffered']
    #allocation8 [shape = 'u8[65536]{0}', space=vmem, size = 0x10000, scoped, tag = 'input window, operand 3, single buffered']
    #allocation9 [shape = 's32[1]{0}', space=sflag, size = 0x4, scoped, tag = 'scoped memory for run.1']
    #allocation10 [shape = 'u8[512]{0}', space=smem, size = 0x200, scoped, tag = 'output window, operand 0, single buffered']
    %9 = vsyncpa [#allocation3], 0
    %10 = vsyncpa [#allocation6], 0
    %11 = vsyncpa [#allocation9], 0
    %12 = vsyncpa [#allocation4], 0
    // Predicated region
    $region2: #{run.1} parent=1 // pred_check
      _
    $region3: #{run.1} parent=1 // pred_check_branch
      %14 = sbr.rel (0) target = $region5
    $region4: #{run.1} parent=1 // pred_region
      %16 = vsyncadd [#allocation3], 0
      %s18 = sshll.u32 %s0, 4
      %s19 = int_to_ptr.hbm [resolvable:$true] %s18
      %s20 = sshll.u32 [#allocation2], 4
      %s21 = int_to_ptr.vmem [resolvable:$true] %s20
      %23 = dma.hbm_to_vmem [thread:$0]  %s19, 16, %s21, [#allocation3]
    $region5: #{run.1} parent=1 // pred_fallthru
      _
    // Predicated region
    $region6: #{run.1} parent=1 // pred_check
      _
    $region7: #{run.1} parent=1 // pred_check_branch
      %25 = sbr.rel (0) target = $region9
    $region8: #{run.1} parent=1 // pred_region
      %27 = vsyncadd [#allocation6], 0
      %s28 = sshll.u32 %s1, 4
      %s29 = int_to_ptr.hbm [resolvable:$true] %s28
      %s30 = sshll.u32 [#allocation5], 4
      %s31 = int_to_ptr.vmem [resolvable:$true] %s30
      %36 = dma.hbm_to_vmem [thread:$0]  %s29, 2048, %s31, [#allocation6], 128, 128, 8
    $region9: #{run.1} parent=1 // pred_fallthru
      _
    // Predicated region
    $region10: #{run.1} parent=1 // pred_check
      _
    $region11: #{run.1} parent=1 // pred_check_branch
      %38 = sbr.rel (0) target = $region13
    $region12: #{run.1} parent=1 // pred_region
      %40 = vsyncadd [#allocation6], 0
      %s41 = sshll.u32 %s2, 4
      %s42 = int_to_ptr.hbm [resolvable:$true] %s41
      %s43 = sshll.u32 [#allocation7], 4
      %s44 = int_to_ptr.vmem [resolvable:$true] %s43
      %49 = dma.hbm_to_vmem [thread:$0]  %s42, 2048, %s44, [#allocation6], 128, 128, 8
    $region13: #{run.1} parent=1 // pred_fallthru
      _
    // Predicated region
    $region14: #{run.1} parent=1 // pred_check
      _
    $region15: #{run.1} parent=1 // pred_check_branch
      %51 = sbr.rel (0) target = $region17
    $region16: #{run.1} parent=1 // pred_region
      %53 = vsyncadd [#allocation9], 0
      %s54 = sshll.u32 %s3, 4
      %s55 = int_to_ptr.hbm [resolvable:$true] %s54
      %s56 = sshll.u32 [#allocation8], 4
      %s57 = int_to_ptr.vmem [resolvable:$true] %s56
      %62 = dma.hbm_to_vmem [thread:$0]  %s55, 2048, %s57, [#allocation9], 128, 128, 8
    $region17: #{run.1} parent=1 // pred_fallthru
      _
    // Predicated region
    $region18: #{run.1} parent=1 // pred_check
      _
    $region19: #{run.1} parent=1 // pred_check_branch
      %64 = sbr.rel (0) target = $region21
    $region20: #{run.1} parent=1 // pred_region
      %66 = dma.done [#allocation3], 16
    $region21: #{run.1} parent=1 // pred_fallthru
      _
    // Predicated region
    $region22: #{run.1} parent=1 // pred_check
      _
    $region23: #{run.1} parent=1 // pred_check_branch
      %68 = sbr.rel (0) target = $region25
    $region24: #{run.1} parent=1 // pred_region
      %70 = dma.done [#allocation6], 2048
    $region25: #{run.1} parent=1 // pred_fallthru
      _
    // Predicated region
    $region26: #{run.1} parent=1 // pred_check
      _
    $region27: #{run.1} parent=1 // pred_check_branch
      %72 = sbr.rel (0) target = $region29
    $region28: #{run.1} parent=1 // pred_region
      %74 = dma.done [#allocation6], 2048
    $region29: #{run.1} parent=1 // pred_fallthru
      _
    // Predicated region
    $region30: #{run.1} parent=1 // pred_check
      _
    $region31: #{run.1} parent=1 // pred_check_branch
      %76 = sbr.rel (0) target = $region33
    $region32: #{run.1} parent=1 // pred_region
      %78 = dma.done [#allocation9], 2048
    $region33: #{run.1} parent=1 // pred_fallthru
      _
    %v79 = vld [vmem:[#allocation2] sm:$0x1]
    %v80 = vld [vmem:[#allocation5] sm:$0xff]
    %v81 = vld [vmem:[#allocation5 + $0x8] sm:$0xff]
    %v82 = vld [vmem:[#allocation5 + $0x10] sm:$0xff]
    %v83 = vld [vmem:[#allocation5 + $0x18] sm:$0xff]
    %v84 = vld [vmem:[#allocation5 + $0x20] sm:$0xff]
    %v85 = vld [vmem:[#allocation5 + $0x28] sm:$0xff]
    %v86 = vld [vmem:[#allocation5 + $0x30] sm:$0xff]
    %v87 = vld [vmem:[#allocation5 + $0x38] sm:$0xff]
    %v88 = vld [vmem:[#allocation5 + $0x40] sm:$0xff]
    %v89 = vld [vmem:[#allocation5 + $0x48] sm:$0xff]
    %v90 = vld [vmem:[#allocation5 + $0x50] sm:$0xff]
    %v91 = vld [vmem:[#allocation5 + $0x58] sm:$0xff]
    %v92 = vld [vmem:[#allocation5 + $0x60] sm:$0xff]
    %v93 = vld [vmem:[#allocation5 + $0x68] sm:$0xff]
    %v94 = vld [vmem:[#allocation5 + $0x70] sm:$0xff]
    %v95 = vld [vmem:[#allocation5 + $0x78] sm:$0xff]
    %v96 = vld [vmem:[#allocation7] sm:$0xff]
    %v97 = vld [vmem:[#allocation7 + $0x8] sm:$0xff]
    %v98 = vld [vmem:[#allocation7 + $0x10] sm:$0xff]
    %v99 = vld [vmem:[#allocation7 + $0x18] sm:$0xff]
    %v100 = vld [vmem:[#allocation7 + $0x20] sm:$0xff]
    %v101 = vld [vmem:[#allocation7 + $0x28] sm:$0xff]
    %v102 = vld [vmem:[#allocation7 + $0x30] sm:$0xff]
    %v103 = vld [vmem:[#allocation7 + $0x38] sm:$0xff]
    %v104 = vld [vmem:[#allocation7 + $0x40] sm:$0xff]
    %v105 = vld [vmem:[#allocation7 + $0x48] sm:$0xff]
    %v106 = vld [vmem:[#allocation7 + $0x50] sm:$0xff]
    %v107 = vld [vmem:[#allocation7 + $0x58] sm:$0xff]
    %v108 = vld [vmem:[#allocation7 + $0x60] sm:$0xff]
    %v109 = vld [vmem:[#allocation7 + $0x68] sm:$0xff]
    %v110 = vld [vmem:[#allocation7 + $0x70] sm:$0xff]
    %v111 = vld [vmem:[#allocation7 + $0x78] sm:$0xff]
    %v112 = vld [vmem:[#allocation8] sm:$0xff]
    %v113 = vld [vmem:[#allocation8 + $0x8] sm:$0xff]
    %v114 = vld [vmem:[#allocation8 + $0x10] sm:$0xff]
    %v115 = vld [vmem:[#allocation8 + $0x18] sm:$0xff]
    %v116 = vld [vmem:[#allocation8 + $0x20] sm:$0xff]
    %v117 = vld [vmem:[#allocation8 + $0x28] sm:$0xff]
    %v118 = vld [vmem:[#allocation8 + $0x30] sm:$0xff]
    %v119 = vld [vmem:[#allocation8 + $0x38] sm:$0xff]
    %v120 = vld [vmem:[#allocation8 + $0x40] sm:$0xff]
    %v121 = vld [vmem:[#allocation8 + $0x48] sm:$0xff]
    %v122 = vld [vmem:[#allocation8 + $0x50] sm:$0xff]
    %v123 = vld [vmem:[#allocation8 + $0x58] sm:$0xff]
    %v124 = vld [vmem:[#allocation8 + $0x60] sm:$0xff]
    %v125 = vld [vmem:[#allocation8 + $0x68] sm:$0xff]
    %v126 = vld [vmem:[#allocation8 + $0x70] sm:$0xff]
    %v127 = vld [vmem:[#allocation8 + $0x78] sm:$0xff]
    %v128 = vperm.slane %v79, 0
    %129 = vset.pattern.permute.xlu0 0
    %130 = vperm.xlu0 %129, %v80
    %v131 = vpop.permute.xlu0 %130
    %132 = vset.pattern.permute.xlu0 0
    %133 = vperm.xlu0 %132, %v81
    %v134 = vpop.permute.xlu0 %133
    %135 = vset.pattern.permute.xlu0 0
    %136 = vperm.xlu0 %135, %v82
    %v137 = vpop.permute.xlu0 %136
    %138 = vset.pattern.permute.xlu0 0
    %139 = vperm.xlu0 %138, %v83
    %v140 = vpop.permute.xlu0 %139
    %141 = vset.pattern.permute.xlu0 0
    %142 = vperm.xlu0 %141, %v84
    %v143 = vpop.permute.xlu0 %142
    %144 = vset.pattern.permute.xlu0 0
    %145 = vperm.xlu0 %144, %v85
    %v146 = vpop.permute.xlu0 %145
    %147 = vset.pattern.permute.xlu0 0
    %148 = vperm.xlu0 %147, %v86
    %v149 = vpop.permute.xlu0 %148
    %150 = vset.pattern.permute.xlu0 0
    %151 = vperm.xlu0 %150, %v87
    %v152 = vpop.permute.xlu0 %151
    %153 = vset.pattern.permute.xlu0 0
    %154 = vperm.xlu0 %153, %v88
    %v155 = vpop.permute.xlu0 %154
    %156 = vset.pattern.permute.xlu0 0
    %157 = vperm.xlu0 %156, %v89
    %v158 = vpop.permute.xlu0 %157
    %159 = vset.pattern.permute.xlu0 0
    %160 = vperm.xlu0 %159, %v90
    %v161 = vpop.permute.xlu0 %160
    %162 = vset.pattern.permute.xlu0 0
    %163 = vperm.xlu0 %162, %v91
    %v164 = vpop.permute.xlu0 %163
    %165 = vset.pattern.permute.xlu0 0
    %166 = vperm.xlu0 %165, %v92
    %v167 = vpop.permute.xlu0 %166
    %168 = vset.pattern.permute.xlu0 0
    %169 = vperm.xlu0 %168, %v93
    %v170 = vpop.permute.xlu0 %169
    %171 = vset.pattern.permute.xlu0 0
    %172 = vperm.xlu0 %171, %v94
    %v173 = vpop.permute.xlu0 %172
    %174 = vset.pattern.permute.xlu0 0
    %175 = vperm.xlu0 %174, %v95
    %v176 = vpop.permute.xlu0 %175
    %vm177 = vcmp.eq.s32.totalorder %v128, %v131
    %vm178 = vcmp.eq.s32.totalorder %v128, %v134
    %vm179 = vcmp.eq.s32.totalorder %v128, %v137
    %vm180 = vcmp.eq.s32.totalorder %v128, %v140
    %vm181 = vcmp.eq.s32.totalorder %v128, %v143
    %vm182 = vcmp.eq.s32.totalorder %v128, %v146
    %vm183 = vcmp.eq.s32.totalorder %v128, %v149
    %vm184 = vcmp.eq.s32.totalorder %v128, %v152
    %vm185 = vcmp.eq.s32.totalorder %v128, %v155
    %vm186 = vcmp.eq.s32.totalorder %v128, %v158
    %vm187 = vcmp.eq.s32.totalorder %v128, %v161
    %vm188 = vcmp.eq.s32.totalorder %v128, %v164
    %vm189 = vcmp.eq.s32.totalorder %v128, %v167
    %vm190 = vcmp.eq.s32.totalorder %v128, %v170
    %vm191 = vcmp.eq.s32.totalorder %v128, %v173
    %vm192 = vcmp.eq.s32.totalorder %v128, %v176
    %193 = vset.pattern.permute.xlu0 0
    %194 = vperm.xlu0 %193, %v96
    %v195 = vpop.permute.xlu0 %194
    %196 = vset.pattern.permute.xlu0 0
    %197 = vperm.xlu0 %196, %v97
    %v198 = vpop.permute.xlu0 %197
    %199 = vset.pattern.permute.xlu0 0
    %200 = vperm.xlu0 %199, %v98
    %v201 = vpop.permute.xlu0 %200
    %202 = vset.pattern.permute.xlu0 0
    %203 = vperm.xlu0 %202, %v99
    %v204 = vpop.permute.xlu0 %203
    %205 = vset.pattern.permute.xlu0 0
    %206 = vperm.xlu0 %205, %v100
    %v207 = vpop.permute.xlu0 %206
    %208 = vset.pattern.permute.xlu0 0
    %209 = vperm.xlu0 %208, %v101
    %v210 = vpop.permute.xlu0 %209
    %211 = vset.pattern.permute.xlu0 0
    %212 = vperm.xlu0 %211, %v102
    %v213 = vpop.permute.xlu0 %212
    %214 = vset.pattern.permute.xlu0 0
    %215 = vperm.xlu0 %214, %v103
    %v216 = vpop.permute.xlu0 %215
    %217 = vset.pattern.permute.xlu0 0
    %218 = vperm.xlu0 %217, %v104
    %v219 = vpop.permute.xlu0 %218
    %220 = vset.pattern.permute.xlu0 0
    %221 = vperm.xlu0 %220, %v105
    %v222 = vpop.permute.xlu0 %221
    %223 = vset.pattern.permute.xlu0 0
    %224 = vperm.xlu0 %223, %v106
    %v225 = vpop.permute.xlu0 %224
    %226 = vset.pattern.permute.xlu0 0
    %227 = vperm.xlu0 %226, %v107
    %v228 = vpop.permute.xlu0 %227
    %229 = vset.pattern.permute.xlu0 0
    %230 = vperm.xlu0 %229, %v108
    %v231 = vpop.permute.xlu0 %230
    %232 = vset.pattern.permute.xlu0 0
    %233 = vperm.xlu0 %232, %v109
    %v234 = vpop.permute.xlu0 %233
    %235 = vset.pattern.permute.xlu0 0
    %236 = vperm.xlu0 %235, %v110
    %v237 = vpop.permute.xlu0 %236
    %238 = vset.pattern.permute.xlu0 0
    %239 = vperm.xlu0 %238, %v111
    %v240 = vpop.permute.xlu0 %239
    %vm241 = vcmp.eq.s32.totalorder %v128, %v195
    %vm242 = vcmp.eq.s32.totalorder %v128, %v198
    %vm243 = vcmp.eq.s32.totalorder %v128, %v201
    %vm244 = vcmp.eq.s32.totalorder %v128, %v204
    %vm245 = vcmp.eq.s32.totalorder %v128, %v207
    %vm246 = vcmp.eq.s32.totalorder %v128, %v210
    %vm247 = vcmp.eq.s32.totalorder %v128, %v213
    %vm248 = vcmp.eq.s32.totalorder %v128, %v216
    %vm249 = vcmp.eq.s32.totalorder %v128, %v219
    %vm250 = vcmp.eq.s32.totalorder %v128, %v222
    %vm251 = vcmp.eq.s32.totalorder %v128, %v225
    %vm252 = vcmp.eq.s32.totalorder %v128, %v228
    %vm253 = vcmp.eq.s32.totalorder %v128, %v231
    %vm254 = vcmp.eq.s32.totalorder %v128, %v234
    %vm255 = vcmp.eq.s32.totalorder %v128, %v237
    %vm256 = vcmp.eq.s32.totalorder %v128, %v240
    %vm257 = vmor %vm177, %vm241
    %vm258 = vmor %vm178, %vm242
    %vm259 = vmor %vm179, %vm243
    %vm260 = vmor %vm180, %vm244
    %vm261 = vmor %vm181, %vm245
    %vm262 = vmor %vm182, %vm246
    %vm263 = vmor %vm183, %vm247
    %vm264 = vmor %vm184, %vm248
    %vm265 = vmor %vm185, %vm249
    %vm266 = vmor %vm186, %vm250
    %vm267 = vmor %vm187, %vm251
    %vm268 = vmor %vm188, %vm252
    %vm269 = vmor %vm189, %vm253
    %vm270 = vmor %vm190, %vm254
    %vm271 = vmor %vm191, %vm255
    %vm272 = vmor %vm192, %vm256
    %273 = vset.pattern.permute.xlu0 0
    %274 = vperm.xlu0 %273, %v112
    %v275 = vpop.permute.xlu0 %274
    %276 = vset.pattern.permute.xlu0 0
    %277 = vperm.xlu0 %276, %v113
    %v278 = vpop.permute.xlu0 %277
    %279 = vset.pattern.permute.xlu0 0
    %280 = vperm.xlu0 %279, %v114
    %v281 = vpop.permute.xlu0 %280
    %282 = vset.pattern.permute.xlu0 0
    %283 = vperm.xlu0 %282, %v115
    %v284 = vpop.permute.xlu0 %283
    %285 = vset.pattern.permute.xlu0 0
    %286 = vperm.xlu0 %285, %v116
    %v287 = vpop.permute.xlu0 %286
    %288 = vset.pattern.permute.xlu0 0
    %289 = vperm.xlu0 %288, %v117
    %v290 = vpop.permute.xlu0 %289
    %291 = vset.pattern.permute.xlu0 0
    %292 = vperm.xlu0 %291, %v118
    %v293 = vpop.permute.xlu0 %292
    %294 = vset.pattern.permute.xlu0 0
    %295 = vperm.xlu0 %294, %v119
    %v296 = vpop.permute.xlu0 %295
    %297 = vset.pattern.permute.xlu0 0
    %298 = vperm.xlu0 %297, %v120
    %v299 = vpop.permute.xlu0 %298
    %300 = vset.pattern.permute.xlu0 0
    %301 = vperm.xlu0 %300, %v121
    %v302 = vpop.permute.xlu0 %301
    %303 = vset.pattern.permute.xlu0 0
    %304 = vperm.xlu0 %303, %v122
    %v305 = vpop.permute.xlu0 %304
    %306 = vset.pattern.permute.xlu0 0
    %307 = vperm.xlu0 %306, %v123
    %v308 = vpop.permute.xlu0 %307
    %309 = vset.pattern.permute.xlu0 0
    %310 = vperm.xlu0 %309, %v124
    %v311 = vpop.permute.xlu0 %310
    %312 = vset.pattern.permute.xlu0 0
    %313 = vperm.xlu0 %312, %v125
    %v314 = vpop.permute.xlu0 %313
    %315 = vset.pattern.permute.xlu0 0
    %316 = vperm.xlu0 %315, %v126
    %v317 = vpop.permute.xlu0 %316
    %318 = vset.pattern.permute.xlu0 0
    %319 = vperm.xlu0 %318, %v127
    %v320 = vpop.permute.xlu0 %319
    %vm321 = vcmp.eq.s32.totalorder %v128, %v275
    %vm322 = vcmp.eq.s32.totalorder %v128, %v278
    %vm323 = vcmp.eq.s32.totalorder %v128, %v281
    %vm324 = vcmp.eq.s32.totalorder %v128, %v284
    %vm325 = vcmp.eq.s32.totalorder %v128, %v287
    %vm326 = vcmp.eq.s32.totalorder %v128, %v290
    %vm327 = vcmp.eq.s32.totalorder %v128, %v293
    %vm328 = vcmp.eq.s32.totalorder %v128, %v296
    %vm329 = vcmp.eq.s32.totalorder %v128, %v299
    %vm330 = vcmp.eq.s32.totalorder %v128, %v302
    %vm331 = vcmp.eq.s32.totalorder %v128, %v305
    %vm332 = vcmp.eq.s32.totalorder %v128, %v308
    %vm333 = vcmp.eq.s32.totalorder %v128, %v311
    %vm334 = vcmp.eq.s32.totalorder %v128, %v314
    %vm335 = vcmp.eq.s32.totalorder %v128, %v317
    %vm336 = vcmp.eq.s32.totalorder %v128, %v320
    %vm337 = vmor %vm257, %vm321
    %vm338 = vmor %vm258, %vm322
    %vm339 = vmor %vm259, %vm323
    %vm340 = vmor %vm260, %vm324
    %vm341 = vmor %vm261, %vm325
    %vm342 = vmor %vm262, %vm326
    %vm343 = vmor %vm263, %vm327
    %vm344 = vmor %vm264, %vm328
    %vm345 = vmor %vm265, %vm329
    %vm346 = vmor %vm266, %vm330
    %vm347 = vmor %vm267, %vm331
    %vm348 = vmor %vm268, %vm332
    %vm349 = vmor %vm269, %vm333
    %vm350 = vmor %vm270, %vm334
    %vm351 = vmor %vm271, %vm335
    %vm352 = vmor %vm272, %vm336
    %v353 = vsel %vm337, 1, 0
    %v354 = vsel %vm338, 1, 0
    %v355 = vsel %vm339, 1, 0
    %v356 = vsel %vm340, 1, 0
    %v357 = vsel %vm341, 1, 0
    %v358 = vsel %vm342, 1, 0
    %v359 = vsel %vm343, 1, 0
    %v360 = vsel %vm344, 1, 0
    %v361 = vsel %vm345, 1, 0
    %v362 = vsel %vm346, 1, 0
    %v363 = vsel %vm347, 1, 0
    %v364 = vsel %vm348, 1, 0
    %v365 = vsel %vm349, 1, 0
    %v366 = vsel %vm350, 1, 0
    %v367 = vsel %vm351, 1, 0
    %v368 = vsel %vm352, 1, 0
    %369 = vrot.lane.b32.xlu0 %v353, 1
    %v370 = vpop.permute.xlu0 %369
    %371 = vrot.lane.b32.xlu0 %v354, 1
    %v372 = vpop.permute.xlu0 %371
    %373 = vrot.lane.b32.xlu0 %v355, 1
    %v374 = vpop.permute.xlu0 %373
    %375 = vrot.lane.b32.xlu0 %v356, 1
    %v376 = vpop.permute.xlu0 %375
    %377 = vrot.lane.b32.xlu0 %v357, 1
    %v378 = vpop.permute.xlu0 %377
    %379 = vrot.lane.b32.xlu0 %v358, 1
    %v380 = vpop.permute.xlu0 %379
    %381 = vrot.lane.b32.xlu0 %v359, 1
    %v382 = vpop.permute.xlu0 %381
    %383 = vrot.lane.b32.xlu0 %v360, 1
    %v384 = vpop.permute.xlu0 %383
    %385 = vrot.lane.b32.xlu0 %v361, 1
    %v386 = vpop.permute.xlu0 %385
    %387 = vrot.lane.b32.xlu0 %v362, 1
    %v388 = vpop.permute.xlu0 %387
    %389 = vrot.lane.b32.xlu0 %v363, 1
    %v390 = vpop.permute.xlu0 %389
    %391 = vrot.lane.b32.xlu0 %v364, 1
    %v392 = vpop.permute.xlu0 %391
    %393 = vrot.lane.b32.xlu0 %v365, 1
    %v394 = vpop.permute.xlu0 %393
    %395 = vrot.lane.b32.xlu0 %v366, 1
    %v396 = vpop.permute.xlu0 %395
    %397 = vrot.lane.b32.xlu0 %v367, 1
    %v398 = vpop.permute.xlu0 %397
    %399 = vrot.lane.b32.xlu0 %v368, 1
    %v400 = vpop.permute.xlu0 %399
    %401 = vrot.lane.b32.xlu0 %v353, 2
    %v402 = vpop.permute.xlu0 %401
    %403 = vrot.lane.b32.xlu0 %v354, 2
    %v404 = vpop.permute.xlu0 %403
    %405 = vrot.lane.b32.xlu0 %v355, 2
    %v406 = vpop.permute.xlu0 %405
    %407 = vrot.lane.b32.xlu0 %v356, 2
    %v408 = vpop.permute.xlu0 %407
    %409 = vrot.lane.b32.xlu0 %v357, 2
    %v410 = vpop.permute.xlu0 %409
    %411 = vrot.lane.b32.xlu0 %v358, 2
    %v412 = vpop.permute.xlu0 %411
    %413 = vrot.lane.b32.xlu0 %v359, 2
    %v414 = vpop.permute.xlu0 %413
    %415 = vrot.lane.b32.xlu0 %v360, 2
    %v416 = vpop.permute.xlu0 %415
    %417 = vrot.lane.b32.xlu0 %v361, 2
    %v418 = vpop.permute.xlu0 %417
    %419 = vrot.lane.b32.xlu0 %v362, 2
    %v420 = vpop.permute.xlu0 %419
    %421 = vrot.lane.b32.xlu0 %v363, 2
    %v422 = vpop.permute.xlu0 %421
    %423 = vrot.lane.b32.xlu0 %v364, 2
    %v424 = vpop.permute.xlu0 %423
    %425 = vrot.lane.b32.xlu0 %v365, 2
    %v426 = vpop.permute.xlu0 %425
    %427 = vrot.lane.b32.xlu0 %v366, 2
    %v428 = vpop.permute.xlu0 %427
    %429 = vrot.lane.b32.xlu0 %v367, 2
    %v430 = vpop.permute.xlu0 %429
    %431 = vrot.lane.b32.xlu0 %v368, 2
    %v432 = vpop.permute.xlu0 %431
    %v433 = vand.u32 %v353, %v370
    %v434 = vand.u32 %v354, %v372
    %v435 = vand.u32 %v355, %v374
    %v436 = vand.u32 %v356, %v376
    %v437 = vand.u32 %v357, %v378
    %v438 = vand.u32 %v358, %v380
    %v439 = vand.u32 %v359, %v382
    %v440 = vand.u32 %v360, %v384
    %v441 = vand.u32 %v361, %v386
    %v442 = vand.u32 %v362, %v388
    %v443 = vand.u32 %v363, %v390
    %v444 = vand.u32 %v364, %v392
    %v445 = vand.u32 %v365, %v394
    %v446 = vand.u32 %v366, %v396
    %v447 = vand.u32 %v367, %v398
    %v448 = vand.u32 %v368, %v400
    %v449 = vand.u32 %v433, %v402
    %v450 = vand.u32 %v434, %v404
    %v451 = vand.u32 %v435, %v406
    %v452 = vand.u32 %v436, %v408
    %v453 = vand.u32 %v437, %v410
    %v454 = vand.u32 %v438, %v412
    %v455 = vand.u32 %v439, %v414
    %v456 = vand.u32 %v440, %v416
    %v457 = vand.u32 %v441, %v418
    %v458 = vand.u32 %v442, %v420
    %v459 = vand.u32 %v443, %v422
    %v460 = vand.u32 %v444, %v424
    %v461 = vand.u32 %v445, %v426
    %v462 = vand.u32 %v446, %v428
    %v463 = vand.u32 %v447, %v430
    %v464 = vand.u32 %v448, %v432
    %v465 = vadd.s32 %v449, %v453
    %v466 = vadd.s32 %v450, %v454
    %v467 = vadd.s32 %v451, %v455
    %v468 = vadd.s32 %v452, %v456
    %v469 = vadd.s32 %v465, %v457
    %v470 = vadd.s32 %v466, %v458
    %v471 = vadd.s32 %v467, %v459
    %v472 = vadd.s32 %v468, %v460
    %v473 = vadd.s32 %v469, %v461
    %v474 = vadd.s32 %v470, %v462
    %v475 = vadd.s32 %v471, %v463
    %v476 = vadd.s32 %v472, %v464
    %v477 = vadd.s32 %v473, %v474
    %v478 = vadd.s32 %v475, %v476
    %v479 = vadd.s32 %v477, %v478
    %v480 = vrot.slane %v479, 4
    %v481 = vadd.s32 %v479, %v480
    %v482 = vrot.slane %v481, 2
    %v483 = vadd.s32 %v481, %v482
    %v484 = vrot.slane %v483, 1
    %v485 = vadd.s32 %v483, %v484
    %486 = vrot.lane.b32.xlu0 %v79, 1
    %v487 = vpop.permute.xlu0 %486
    %488 = vrot.lane.b32.xlu0 %v79, 2
    %v489 = vpop.permute.xlu0 %488
    %v490 = vlaneseq
    %v491 = vand.u32 %v490, 127
    %vm492 = vcmp.ge.s32.totalorder %v491, 3
    %vm493 = vcmp.ne.s32.totalorder %v487, %v489
    %vm494 = vmand %vm492, %vm493
    %vm495 = vcmp.gt.s32.totalorder %v79, 100
    %v496 = vsel %vm495, 1, 0
    %v497 = vmul.u32 %v496, 1000
    %v498 = vsel %vm494, %v485, 0
    %v499 = vmul.u32 %v498, 100
    %v500 = vsub.s32 %v497, %v499
    %vm501 = vcmask 1040384
    %v502 = vsel %vm501, %v500, 0
    %v503 = vand.u32 %v502, 65535
    %v504 = vshrl.u32 %v502, 16
    %v505 = vcvt.s32.f32 %v503
    %v506 = vcvt.s32.f32 %v504
    %507 = vadd.xlane.f32.xlu0 %v505
    %v508 = vpop.xlane.xlu0 %507
    %509 = vadd.xlane.f32.xlu0 %v506
    %v510 = vpop.xlane.xlu0 %509
    %v511 = vcvt.f32.s32 %v508
    %v512 = vcvt.f32.s32 %v510
    %v513 = vshll.u32 %v512, 16
    %v514 = vadd.s32 %v513, %v511
    %v515 = vrot.slane %v514, 4
    %v516 = vadd.s32 %v514, %v515
    %v517 = vrot.slane %v516, 2
    %v518 = vadd.s32 %v516, %v517
    %v519 = vrot.slane %v518, 1
    %v520 = vadd.s32 %v518, %v519
    %s521 = vtos %v520
    %s522 = sadd.s32 %s521, 1000
    %s523 = scalar_lea.smem [#allocation10], 0
    %524 = sst [smem:[%s523]] %s522
    // Predicated region
    $region34: #{run.1} parent=1 // pred_check
      _
    $region35: #{run.1} parent=1 // pred_check_branch
      %526 = sbr.rel (0) target = $region37
    $region36: #{run.1} parent=1 // pred_region
      %528 = vsyncadd [#allocation4], 0
      %s530 = sshll.u32 %s4, 4
      %s531 = int_to_ptr.hbm [resolvable:$true] %s530
      %533 = dma.smem_to_hbm [#allocation10], 16, %s531, [#allocation4]
    $region37: #{run.1} parent=1 // pred_fallthru
      _
    // Predicated region
    $region38: #{run.1} parent=1 // pred_check
      _
    $region39: #{run.1} parent=1 // pred_check_branch
      %535 = sbr.rel (0) target = $region41
    $region40: #{run.1} parent=1 // pred_region
      %537 = dma.done [#allocation4], 16
    $region41: #{run.1} parent=1 // pred_fallthru
      _
    %538 = sfence
    %539 = vsyncpa [#allocation3], 1
    %540 = vsyncpa [#allocation6], 1
    %541 = vsyncpa [#allocation9], 1
    %542 = vsyncpa [#allocation4], 1

</llo_original>
